<compile_context>
chip_gen: v7x
topology: tpu7x:2x2x1
jax: 0.10.0
libtpu: 0.0.40
codegen_flags: <defaults>
</compile_context>

<pallas_src>
import math

import jax
import jax.numpy as jnp
from jax.experimental import pallas as pl
from jax.experimental.pallas import tpu as pltpu


_TEMPORAL_SIZES = (13, 32, 7, 24)   # month, day, weekday, hour  (embed='fixed', freq='h')
_LANE = 128
_SUBLANE = 8


def _round_up(x, m):
    return -(-x // m) * m


# ----------------------------- Pallas kernel -----------------------------------

def _data_embedding_kernel(xt_ref, idx_ref, rhs_ref, o_ref):
    """One grid step = TILE_B batches, fused into a single MXU pass.

    xt_ref:  (TILE_B, L, 3*c_in)  f32  circularly stacked taps [x[t-1] | x[t] | x[t+1]]
    idx_ref: (TILE_B, L, 5)       i32  one-hot column ids (4 temporal + 1 positional),
                                       relative to the table portion of the RHS slab
    rhs_ref: (3*c_in + R + L, d_model) f32  fused slab [W taps ; temporal tables ; pe[:L]]
    o_ref:   (TILE_B*L, d_model)  f32  output rows in row-major (b, t) order
    """
    tile_b, seq_len, c3 = xt_ref.shape
    n_hot = idx_ref.shape[-1]
    n_tbl = rhs_ref.shape[0] - c3
    rows = tile_b * seq_len

    # Flatten (TILE_B, L, *) -> (rows, *); layout-preserving when L % 8 == 0.
    conv_lhs = xt_ref[...].reshape(rows, c3)            # (rows, 3*c_in)
    idx2 = idx_ref[...].reshape(rows, n_hot)            # (rows, 5) i32

    # Multi-hot rows (4 temporal + 1 positional one per row) over the table portion of
    # the slab.  mh @ [tables ; pe] == the 4 embedding gathers + the positional add, so
    # the whole additive term rides the same MXU pass as the conv.
    col = jax.lax.broadcasted_iota(jnp.int32, (rows, n_tbl), 1)
    hot = col == idx2[:, 0:1]
    for f in range(1, n_hot):
        hot = jnp.logical_or(hot, col == idx2[:, f:f + 1])   # index ranges are disjoint
    mh = hot.astype(jnp.float32)

    # Single fused LHS and ONE matmul (MXU default precision: bf16 passes, f32 accum),
    # replacing 4 separate dots + 3 output-sized VPU adds.
    lhs = jnp.concatenate([conv_lhs, mh], axis=-1)      # (rows, K)
    acc = jnp.dot(lhs, rhs_ref[...], preferred_element_type=jnp.float32)

    # One lane-dense, full-block store per grid step.
    o_ref[...] = acc.astype(o_ref.dtype)


# --------------------------- tiling / VMEM policy -------------------------------

def _vmem_limit_bytes():
    """Generation-aware scoped-VMEM limit (v5e/v6e: 128 MiB parts -> 64 MiB;
    v7x: 64 MiB parts -> 32 MiB), with a conservative fallback."""
    try:
        cap = int(pltpu.get_tpu_info().vmem_capacity_bytes)
    except Exception:
        cap = 64 << 20
    return min(64 << 20, max(28 << 20, cap // 2))


def _pick_tile_b(batch, seq_len, c3, n_hot, d_model, k_total, vmem_budget_bytes):
    """Pick TILE_B with (8,128)-padded footprint accounting.  Policy: prefer >=2 grid
    steps (v7x megacore), and the *smallest* tile whose output block reaches ~2 MiB
    rather than the largest tile that fits."""
    lp = _round_up(seq_len, _SUBLANE)
    dpad = _round_up(d_model, _LANE)
    kpad = _round_up(k_total, _LANE)

    def per_step_bytes(tb):
        rows_p = _round_up(tb * seq_len, _SUBLANE)
        xt_blk = tb * lp * _round_up(c3, _LANE) * 4        # lane-padded input block
        id_blk = tb * lp * _round_up(n_hot, _LANE) * 4     # lane-padded index block
        out_blk = rows_p * dpad * 4
        blocks = 3 * (xt_blk + id_blk) + 2 * out_blk       # pipelined buffers
        resident = 2 * _round_up(k_total, _SUBLANE) * dpad * 4   # fused RHS slab
        live = rows_p * 4 * (2 * kpad + dpad + 2 * _LANE)  # lhs, mh, acc, misc vregs
        return blocks + resident + live

    divisors = [d for d in range(1, batch + 1) if batch % d == 0]
    # (tile_b*L) must be 8-divisible for the flat output block unless the block is full.
    legal = [d for d in divisors if d == batch or (d * seq_len) % _SUBLANE == 0]
    fits = [d for d in legal if per_step_bytes(d) <= vmem_budget_bytes] or legal
    multi = [d for d in fits if batch // d >= 2] or fits   # >=2 steps when possible
    target_out_block = 2 << 20                             # ~2 MiB output block suffices
    for d in multi:
        if d * seq_len * d_model * 4 >= target_out_block:
            return d
    return multi[-1]


# --------------------------------- wrapper ---------------------------------------

def data_embedding_pallas(x, idx, rhs_slab, *, tile_b=None):
    """x: (B, L, c_in) f32; idx: (B, L, 5) i32 one-hot column ids (relative to the table
    portion of rhs_slab); rhs_slab: (3*c_in + R + L, d_model) f32."""
    B, L, c_in = x.shape
    n_hot = idx.shape[-1]
    k_total, d_model = rhs_slab.shape
    c3 = 3 * c_in
    assert k_total > c3

    # Circular 3-tap stack built once in XLA (c_in-sized, a few % of the output traffic);
    # keeps the kernel free of sub-tile shift/concat relayouts.
    x_taps = jnp.concatenate([jnp.roll(x, 1, axis=1), x, jnp.roll(x, -1, axis=1)], axis=-1)

    vmem_limit = _vmem_limit_bytes()
    if tile_b is None:
        tile_b = _pick_tile_b(B, L, c3, n_hot, d_model, k_total, int(0.7 * vmem_limit))
    assert B % tile_b == 0, (B, tile_b)
    assert tile_b == B or (tile_b * L) % _SUBLANE == 0, (tile_b, L)
    num_steps = B // tile_b

    xt_spec = pl.BlockSpec((tile_b, L, c3), lambda g: (g, 0, 0))
    id_spec = pl.BlockSpec((tile_b, L, n_hot), lambda g: (g, 0, 0))
    if num_steps >= 3:
        # Deeper input buffering is cheap (blocks are tiny) and smooths the
        # writeback-dominated pipeline when the grid is long enough.
        xt_spec = pl.BlockSpec((tile_b, L, c3), lambda g: (g, 0, 0),
                               pipeline_mode=pl.Buffered(3))
        id_spec = pl.BlockSpec((tile_b, L, n_hot), lambda g: (g, 0, 0),
                               pipeline_mode=pl.Buffered(3))

    out_flat = pl.pallas_call(
        _data_embedding_kernel,
        out_shape=jax.ShapeDtypeStruct((B * L, d_model), jnp.float32),
        grid_spec=pltpu.PrefetchScalarGridSpec(
            num_scalar_prefetch=0,
            grid=(num_steps,),
            in_specs=[
                xt_spec,
                id_spec,
                # Constant index map: the fused weight/table/pe slab is DMA'd once and
                # stays VMEM-resident across grid steps.
                pl.BlockSpec((k_total, d_model), lambda g: (0, 0)),
            ],
            # Output presented flat so each step stores one lane-dense slab
            # (unmasked vst when d_model % 128 == 0).
            out_specs=pl.BlockSpec((tile_b * L, d_model), lambda g: (g, 0)),
        ),
        compiler_params=pltpu.CompilerParams(
            dimension_semantics=("parallel",),
            vmem_limit_bytes=vmem_limit,
        ),
    )(x_taps, idx, rhs_slab)

    return out_flat.reshape(B, L, d_model)   # free row-major bitcast outside the kernel


# --------------------------- parameter / table setup ---------------------------

def sinusoid_table(n_rows, d_model):
    """Same formula as PositionalEmbedding / FixedEmbedding."""
    position = jnp.arange(n_rows, dtype=jnp.float32)[:, None]
    div_term = jnp.exp(jnp.arange(0, d_model, 2, dtype=jnp.float32)
                       * -(math.log(10000.0) / d_model))
    pe = jnp.zeros((n_rows, d_model), dtype=jnp.float32)
    pe = pe.at[:, 0::2].set(jnp.sin(position * div_term))
    pe = pe.at[:, 1::2].set(jnp.cos(position * div_term))
    return pe


def build_temporal_tables(d_model):
    tables = tuple(sinusoid_table(s, d_model) for s in _TEMPORAL_SIZES)
    offsets, acc = [], 0
    for s in _TEMPORAL_SIZES:
        offsets.append(acc)
        acc += s
    return tables, jnp.concatenate(tables, axis=0), jnp.asarray(offsets, jnp.int32)


def init_token_conv_weight(key, c_in, d_model):
    """nn.Conv1d(c_in, d_model, k=3, bias=False), kaiming_normal_(fan_in, leaky_relu)."""
    fan_in = c_in * 3
    std = math.sqrt(2.0) / math.sqrt(fan_in)
    return jax.random.normal(key, (d_model, c_in, 3), dtype=jnp.float32) * std


# ------------------------------- reference (JAX) -------------------------------

def reference_forward(x, x_mark, conv_w, tables, pe):
    B, L, c_in = x.shape
    hi = jax.lax.Precision.HIGHEST
    x_prev = jnp.roll(x, 1, axis=1)
    x_next = jnp.roll(x, -1, axis=1)
    w0, w1, w2 = (conv_w[:, :, k].T for k in range(3))
    val = (jnp.einsum("blc,cd->bld", x_prev, w0, precision=hi)
           + jnp.einsum("blc,cd->bld", x, w1, precision=hi)
           + jnp.einsum("blc,cd->bld", x_next, w2, precision=hi))
    month_t, day_t, weekday_t, hour_t = tables
    xm = x_mark.astype(jnp.int32)
    temporal = (jnp.take(hour_t, xm[:, :, 3], axis=0)
                + jnp.take(weekday_t, xm[:, :, 2], axis=0)
                + jnp.take(day_t, xm[:, :, 1], axis=0)
                + jnp.take(month_t, xm[:, :, 0], axis=0))
    return val + temporal + pe[None, :L, :]        # dropout = identity (eval)


# ------------------------------------ main --------------------------------------

if __name__ == "__main__":
    # Small shapes consistent with DataEmbedding(c_in, d_model, embed_type='fixed', freq='h');
    # d_model kept a multiple of 128 so output stores are lane-dense.
    B, L, c_in, d_model = 4, 8, 4, 128
    MAX_LEN = 5000

    key = jax.random.PRNGKey(0)
    k_x, k_w, k_mo, k_da, k_wd, k_hr = jax.random.split(key, 6)

    x = jax.random.normal(k_x, (B, L, c_in), dtype=jnp.float32)
    # x_mark columns: [month (0..12), day (0..31), weekday (0..6), hour (0..23)]
    x_mark = jnp.stack([
        jax.random.randint(k_mo, (B, L), 0, 13),
        jax.random.randint(k_da, (B, L), 0, 32),
        jax.random.randint(k_wd, (B, L), 0, 7),
        jax.random.randint(k_hr, (B, L), 0, 24),
    ], axis=-1)

    # Parameters / fixed buffers (deterministic, synthetic).
    conv_w = init_token_conv_weight(k_w, c_in, d_model)            # (d_model, c_in, 3)
    tables, table_cat, offsets = build_temporal_tables(d_model)    # table_cat: (76, d_model)
    pe = sinusoid_table(MAX_LEN, d_model)

    # Fused RHS slab: [W_tap0.T ; W_tap1.T ; W_tap2.T ; temporal tables ; pe[:L]].
    w_taps = jnp.transpose(conv_w, (2, 1, 0)).reshape(3 * c_in, d_model)
    rhs_slab = jnp.concatenate([w_taps, table_cat, pe[:L]], axis=0)   # (3*c_in+76+L, d_model)

    # One-hot column ids relative to the table portion of the slab:
    # 4 temporal indices + 1 positional index (R + t) per (b, t) row.
    R = table_cat.shape[0]
    idx_tmp = x_mark.astype(jnp.int32) + offsets[None, None, :]
    idx_pos = jnp.broadcast_to((R + jnp.arange(L, dtype=jnp.int32))[None, :, None], (B, L, 1))
    idx = jnp.concatenate([idx_tmp, idx_pos], axis=-1)                # (B, L, 5)

    # TODO(synk): dropout (p=0.1) is a no-op here (eval-mode forward); the freq='t'
    # minute-embedding branch is not wired up (freq='h' path only).
    out = data_embedding_pallas(x, idx, rhs_slab)
    out = jax.block_until_ready(out)

    ref = reference_forward(x, x_mark, conv_w, tables, pe)
    assert out.shape == (B, L, d_model)
    # Kernel matmul runs at MXU default precision (bf16 passes, f32 accumulate); compare
    # against the exact f32 reference at a correspondingly loosened tolerance.
    assert jnp.allclose(out, ref, atol=5e-2, rtol=5e-2), "mismatch vs JAX reference"

    print("KERNEL_OK")
</pallas_src>

<mosaic_0001>
module attributes {stable_mosaic.version = 11 : i64} {
  func.func @_data_embedding_kernel(%arg0: i32, %arg1: memref<2x8x12xf32, #tpu.memory_space<vmem>>, %arg2: memref<2x8x5xi32, #tpu.memory_space<vmem>>, %arg3: memref<96x128xf32, #tpu.memory_space<vmem>>, %arg4: memref<16x128xf32, #tpu.memory_space<vmem>>) attributes {dimension_semantics = [#tpu.dimension_semantics<parallel>], iteration_bounds = array<i64: 2>, scalar_prefetch = 0 : i64, scratch_operands = 0 : i64, tpu.core_type = #tpu.core_type<tc>, window_params = [{transform_indices = @transform_0, window_bounds = array<i64: 2, 8, 12>}, {transform_indices = @transform_1, window_bounds = array<i64: 2, 8, 5>}, {pipeline_mode = #tpu.pipeline_mode<synchronous>, transform_indices = @transform_2, window_bounds = array<i64: 96, 128>}, {transform_indices = @transform_3, window_bounds = array<i64: 16, 128>}]} {
    %c0 = arith.constant 0 : index
    %c0_0 = arith.constant 0 : index
    %c0_1 = arith.constant 0 : index
    %0 = vector.load %arg1[%c0, %c0_0, %c0_1] : memref<2x8x12xf32, #tpu.memory_space<vmem>>, vector<2x8x12xf32>
    %1 = vector.shape_cast %0 : vector<2x8x12xf32> to vector<16x12xf32>
    %c0_2 = arith.constant 0 : index
    %c0_3 = arith.constant 0 : index
    %c0_4 = arith.constant 0 : index
    %2 = vector.load %arg2[%c0_2, %c0_3, %c0_4] : memref<2x8x5xi32, #tpu.memory_space<vmem>>, vector<2x8x5xi32>
    %3 = vector.shape_cast %2 : vector<2x8x5xi32> to vector<16x5xi32>
    %4 = tpu.iota {dimensions = array<i32: 1>} : vector<16x84xi32>
    %5 = vector.extract_strided_slice %3 {offsets = [0, 0], sizes = [16, 1], strides = [1, 1]} : vector<16x5xi32> to vector<16x1xi32>
    %6 = vector.broadcast %5 : vector<16x1xi32> to vector<16x84xi32>
    %7 = arith.cmpi eq, %4, %6 : vector<16x84xi32>
    %8 = vector.extract_strided_slice %3 {offsets = [0, 1], sizes = [16, 1], strides = [1, 1]} : vector<16x5xi32> to vector<16x1xi32>
    %9 = vector.broadcast %8 : vector<16x1xi32> to vector<16x84xi32>
    %10 = arith.cmpi eq, %4, %9 : vector<16x84xi32>
    %11 = arith.ori %7, %10 : vector<16x84xi1>
    %12 = vector.extract_strided_slice %3 {offsets = [0, 2], sizes = [16, 1], strides = [1, 1]} : vector<16x5xi32> to vector<16x1xi32>
    %13 = vector.broadcast %12 : vector<16x1xi32> to vector<16x84xi32>
    %14 = arith.cmpi eq, %4, %13 : vector<16x84xi32>
    %15 = arith.ori %11, %14 : vector<16x84xi1>
    %16 = vector.extract_strided_slice %3 {offsets = [0, 3], sizes = [16, 1], strides = [1, 1]} : vector<16x5xi32> to vector<16x1xi32>
    %17 = vector.broadcast %16 : vector<16x1xi32> to vector<16x84xi32>
    %18 = arith.cmpi eq, %4, %17 : vector<16x84xi32>
    %19 = arith.ori %15, %18 : vector<16x84xi1>
    %20 = vector.extract_strided_slice %3 {offsets = [0, 4], sizes = [16, 1], strides = [1, 1]} : vector<16x5xi32> to vector<16x1xi32>
    %21 = vector.broadcast %20 : vector<16x1xi32> to vector<16x84xi32>
    %22 = arith.cmpi eq, %4, %21 : vector<16x84xi32>
    %23 = arith.ori %19, %22 : vector<16x84xi1>
    %24 = arith.extui %23 : vector<16x84xi1> to vector<16x84xi32>
    %25 = arith.sitofp %24 : vector<16x84xi32> to vector<16x84xf32>
    %26 = tpu.concatenate %1, %25 in 1 : vector<16x12xf32>, vector<16x84xf32> -> vector<16x96xf32>
    %c0_5 = arith.constant 0 : index
    %c0_6 = arith.constant 0 : index
    %27 = vector.load %arg3[%c0_5, %c0_6] : memref<96x128xf32, #tpu.memory_space<vmem>>, vector<96x128xf32>
    %cst = arith.constant dense<0.000000e+00> : vector<16x128xf32>
    %28 = tpu.matmul %26, %27, %cst {dimension_numbers = #tpu.dot_dimension_numbers<[1], [0], [0], [1], [0, 0, 1, 1], [], []>} : vector<16x96xf32>, vector<96x128xf32>, vector<16x128xf32> -> vector<16x128xf32>
    %c0_7 = arith.constant 0 : index
    %c0_8 = arith.constant 0 : index
    %29 = vector.load %arg4[%c0_7, %c0_8] : memref<16x128xf32, #tpu.memory_space<vmem>>, vector<16x128xf32>
    tpu.vector_store %arg4[%c0_7, %c0_8], %28 {strides = array<i32>} : memref<16x128xf32, #tpu.memory_space<vmem>>, vector<16x128xf32>,
    return
  }
  func.func @transform_0(%arg0: i32) -> (i32, i32, i32) {
    %c0_i32 = arith.constant 0 : i32
    %c0_i32_0 = arith.constant 0 : i32
    %c0_i32_1 = arith.constant 0 : i32
    return %arg0, %c0_i32, %c0_i32_0 : i32, i32, i32
  }
  func.func @transform_1(%arg0: i32) -> (i32, i32, i32) {
    %c0_i32 = arith.constant 0 : i32
    %c0_i32_0 = arith.constant 0 : i32
    %c0_i32_1 = arith.constant 0 : i32
    return %arg0, %c0_i32, %c0_i32_0 : i32, i32, i32
  }
  func.func @transform_2(%arg0: i32) -> (i32, i32) {
    %c0_i32 = arith.constant 0 : i32
    %c0_i32_0 = arith.constant 0 : i32
    %c0_i32_1 = arith.constant 0 : i32
    return %c0_i32, %c0_i32_0 : i32, i32
  }
  func.func @transform_3(%arg0: i32) -> (i32, i32) {
    %c0_i32 = arith.constant 0 : i32
    %c0_i32_0 = arith.constant 0 : i32
    return %arg0, %c0_i32 : i32, i32
  }
}

</mosaic_0001>

<llo_original>
// kernel: tpu_custom_call.1
$region0: #{tpu_custom_call.1}
  #allocation0 [shape = 'u32[]', space=smem, size = 0x4, offset = 0x4, fixed_abs, tag = 'smem constant byte address 0x4 - core index']
  #allocation1 [shape = 'u32[144,128]{1,0:T(1,128)}', space=vmem, size = 0x12000, scoped, tag = 'internal scratch']
  %s0 = inlined_call_operand.vmem [shape: f32[4,8,12], index: 0, kind: input, shape index: {}]
  %s1 = inlined_call_operand.vmem [shape: s32[4,8,5], index: 1, kind: input, shape index: {}]
  %s2 = inlined_call_operand.hbm [shape: f32[96,128], index: 2, kind: input, shape index: {}]
  %s3 = inlined_call_operand.hbm [shape: f32[32,128], index: 3, kind: output, shape index: {}]
  %s4 = sld [smem:[#allocation0]]
  $region49: #{tpu_custom_call.1} parent=0
    _
  %s6 = ssub.s32 1, %s4
  %s7 = scalar_select 0, %s6, %s4
  $region1: #{tpu_custom_call.1} parent=0
    #allocation2 [shape = 'u8[49152]{0}', space=vmem, size = 0xc000, scoped, tag = 'input window, operand 2, single buffered']
    #allocation3 [shape = 's32[2]{0}', space=sflag, size = 0x8, scoped, tag = 'scoped memory for tpu_custom_call.1']
    #allocation4 [shape = 's32[2]{0}', space=sflag, size = 0x8, scoped, tag = 'scoped memory for tpu_custom_call.1']
    #allocation5 [shape = 'u8[16384]{0}', space=vmem, size = 0x4000, scoped, tag = 'output window, operand 0']
    %8 = vsyncpa [#allocation3], 0
    %9 = vsyncpa [#allocation4], 0
    %s10 = scalar_lea.sflag [#allocation4], 1
    %11 = vsyncpa %s10, 0
    loop: start=0, step=1, limit=4
    $region2: #{tpu_custom_call.1} parent=1 // loop_pre_header
      _
    $region3: #{tpu_custom_call.1} parent=1 // loop_header
      %s13 = sphi 0, %s17
      %p14 = scmp.ge.s32.totalorder %s13, 4
      %s23 = sphi 0, %s25
      %s26 = sphi 0, %s23
      %s27 = sphi 0, %s26
      %s43 = sphi 0, %s27
      %s49 = sphi 0, %s51
      %s52 = sphi 0, %s49
      %s53 = sphi 0, %s52
      %s69 = sphi 0, %s53
      %s73 = sphi 0, %s73
      %s75 = sphi 0, %s73
      %s76 = sphi 0, %s75
      %s90 = sphi 0, %s76
      %s96 = sphi 0, %s98
      %s99 = sphi 0, %s96
      %s100 = sphi 0, %s99
      %s116 = sphi 0, %s100
    $region4: #{tpu_custom_call.1} parent=1 // loop_header_branch
      %16 = sbr.rel (%p14) target = $region8
    $region5: #{tpu_custom_call.1} parent=1 // loop_body
      %s18 = ssub.s32 %s13, 1
      %s19 = ssub.s32 %s13, 2
      %s20 = sadd.s32 %s13, 1
      %s21 = ssub.s32 %s13, %s20
      %p22 = scmp.eq.s32.totalorder %s21, 0
      %s24 = sadd.s32 %s23, 1
      %s25 = scalar_select %p22, %s23, %s24
      %p28 = pneg %p22
      %p29 = scmp.eq.s32.totalorder %s13, 1
      %p30 = por %p28, %p29
      %p31 = scmp.ne.s32.totalorder %s23, %s26
      %p32 = scmp.eq.s32.totalorder %s13, 0
      %p33 = por %p31, %p32
      %p34 = scmp.ne.s32.totalorder %s23, %s26
      %p35 = scmp.eq.s32.totalorder %s18, 1
      %p36 = por %p34, %p35
      %p37 = scmp.ne.s32.totalorder %s26, %s27
      %p38 = scmp.eq.s32.totalorder %s18, 0
      %p39 = por %p37, %p38
      %p40 = scmp.ne.s32.totalorder %s26, %s27
      %p41 = scmp.eq.s32.totalorder %s19, 1
      %p42 = por %p40, %p41
      %p44 = scmp.ne.s32.totalorder %s27, %s43
      %p45 = scmp.eq.s32.totalorder %s19, 0
      %p46 = por %p44, %p45
      %s47 = ssub.s32 %s13, %s20
      %p48 = scmp.eq.s32.totalorder %s47, 0
      %s50 = sadd.s32 %s49, 1
      %s51 = scalar_select %p48, %s49, %s50
      %p54 = pneg %p48
      %p55 = scmp.eq.s32.totalorder %s13, 1
      %p56 = por %p54, %p55
      %p57 = scmp.ne.s32.totalorder %s49, %s52
      %p58 = scmp.eq.s32.totalorder %s13, 0
      %p59 = por %p57, %p58
      %p60 = scmp.ne.s32.totalorder %s49, %s52
      %p61 = scmp.eq.s32.totalorder %s18, 1
      %p62 = por %p60, %p61
      %p63 = scmp.ne.s32.totalorder %s52, %s53
      %p64 = scmp.eq.s32.totalorder %s18, 0
      %p65 = por %p63, %p64
      %p66 = scmp.ne.s32.totalorder %s52, %s53
      %p67 = scmp.eq.s32.totalorder %s19, 1
      %p68 = por %p66, %p67
      %p70 = scmp.ne.s32.totalorder %s53, %s69
      %p71 = scmp.eq.s32.totalorder %s19, 0
      %p72 = por %p70, %p71
      %s74 = sadd.s32 %s73, 1
      %p77 = scmp.eq.s32.totalorder %s13, 1
      %p78 = scmp.ne.s32.totalorder %s73, %s75
      %p79 = scmp.eq.s32.totalorder %s13, 0
      %p80 = por %p78, %p79
      %p81 = scmp.ne.s32.totalorder %s73, %s75
      %p82 = scmp.eq.s32.totalorder %s18, 1
      %p83 = por %p81, %p82
      %p84 = scmp.ne.s32.totalorder %s75, %s76
      %p85 = scmp.eq.s32.totalorder %s18, 0
      %p86 = por %p84, %p85
      %p87 = scmp.ne.s32.totalorder %s75, %s76
      %p88 = scmp.eq.s32.totalorder %s19, 1
      %p89 = por %p87, %p88
      %p91 = scmp.ne.s32.totalorder %s76, %s90
      %p92 = scmp.eq.s32.totalorder %s19, 0
      %p93 = por %p91, %p92
      %s94 = ssub.s32 %s13, %s20
      %p95 = scmp.eq.s32.totalorder %s94, 0
      %s97 = sadd.s32 %s96, 1
      %s98 = scalar_select %p95, %s96, %s97
      %p101 = pneg %p95
      %p102 = scmp.eq.s32.totalorder %s13, 1
      %p103 = por %p101, %p102
      %p104 = scmp.ne.s32.totalorder %s96, %s99
      %p105 = scmp.eq.s32.totalorder %s13, 0
      %p106 = por %p104, %p105
      %p107 = scmp.ne.s32.totalorder %s96, %s99
      %p108 = scmp.eq.s32.totalorder %s18, 1
      %p109 = por %p107, %p108
      %p110 = scmp.ne.s32.totalorder %s99, %s100
      %p111 = scmp.eq.s32.totalorder %s18, 0
      %p112 = por %p110, %p111
      %p113 = scmp.ne.s32.totalorder %s99, %s100
      %p114 = scmp.eq.s32.totalorder %s19, 1
      %p115 = por %p113, %p114
      %p117 = scmp.ne.s32.totalorder %s100, %s116
      %p118 = scmp.eq.s32.totalorder %s19, 0
      %p119 = por %p117, %p118
      %p120 = scmp.le.s32.totalorder 1, %s13
      %p121 = scmp.lt.s32.totalorder %s13, 3
      %p122 = pnand %p120, %p121
      %p123 = pneg %p122
      // Predicated region
      $region9: #{tpu_custom_call.1} parent=5 // pred_check
        _
      $region10: #{tpu_custom_call.1} parent=5 // pred_check_branch
        %125 = sbr.rel (%p122) target = $region12
      $region11: #{tpu_custom_call.1} parent=5 // pred_region
        %s126 = ssub.s32 %s13, 1
        // Predicated region
        $region13: #{tpu_custom_call.1} parent=11 // pred_check
          %p127 = pneg %p86
        $region14: #{tpu_custom_call.1} parent=11 // pred_check_branch
          %129 = sbr.rel (%p127) target = $region16
        $region15: #{tpu_custom_call.1} parent=11 // pred_region
          %s131 = ssub.s32 1536, 1536
          %132 = vsyncadd [#allocation3], %s131
          %s133 = sshll.u32 [#allocation2], 4
          %s134 = int_to_ptr.vmem [resolvable:$true] %s133
          %139 = dma.hbm_to_vmem [thread:$0]  %s2, 1536, %s134, [#allocation3], 128, 128, 8
        $region16: #{tpu_custom_call.1} parent=11 // pred_fallthru
          _
      $region12: #{tpu_custom_call.1} parent=5 // pred_fallthru
        _
      %p140 = scmp.lt.s32.totalorder %s13, 2
      // Predicated region
      $region17: #{tpu_custom_call.1} parent=5 // pred_check
        %p141 = pneg %p140
      $region18: #{tpu_custom_call.1} parent=5 // pred_check_branch
        %143 = sbr.rel (%p141) target = $region20
      $region19: #{tpu_custom_call.1} parent=5 // pred_region
        // Predicated region
        $region21: #{tpu_custom_call.1} parent=19 // pred_check
          %p144 = pneg %p33
        $region22: #{tpu_custom_call.1} parent=19 // pred_check_branch
          %146 = sbr.rel (%p144) target = $region24
        $region23: #{tpu_custom_call.1} parent=19 // pred_region
          %s147 = smul.u32 2, %s13
          %p148 = scmp.lt.s32.totalorder %s147, 3
          %s149 = scalar_select %p148, %s147, 3
          %s150 = smul.addr %s149, 8
          %s151 = scalar_lea.vmem %s0, %s150
          %s152 = smul.u32 2, %s13
        $region24: #{tpu_custom_call.1} parent=19 // pred_fallthru
          _
        // Predicated region
        $region25: #{tpu_custom_call.1} parent=19 // pred_check
          %p153 = pneg %p59
        $region26: #{tpu_custom_call.1} parent=19 // pred_check_branch
          %155 = sbr.rel (%p153) target = $region28
        $region27: #{tpu_custom_call.1} parent=19 // pred_region
          %s156 = smul.u32 2, %s13
          %p157 = scmp.lt.s32.totalorder %s156, 3
          %s158 = scalar_select %p157, %s156, 3
          %s159 = smul.addr %s158, 8
          %s160 = scalar_lea.vmem %s1, %s159
          %s161 = smul.u32 2, %s13
        $region28: #{tpu_custom_call.1} parent=19 // pred_fallthru
          _
      $region20: #{tpu_custom_call.1} parent=5 // pred_fallthru
        _
      %p162 = scmp.le.s32.totalorder 1, %s13
      %p163 = scmp.lt.s32.totalorder %s13, 3
      %p164 = pnand %p162, %p163
      %p165 = pneg %p164
      // Predicated region
      $region29: #{tpu_custom_call.1} parent=5 // pred_check
        _
      $region30: #{tpu_custom_call.1} parent=5 // pred_check_branch
        %167 = sbr.rel (%p164) target = $region32
      $region31: #{tpu_custom_call.1} parent=5 // pred_region
        %s168 = ssub.s32 %s13, 1
        // Predicated region
        $region33: #{tpu_custom_call.1} parent=31 // pred_check
          %p169 = pneg %p86
        $region34: #{tpu_custom_call.1} parent=31 // pred_check_branch
          %171 = sbr.rel (%p169) target = $region36
        $region35: #{tpu_custom_call.1} parent=31 // pred_region
          %172 = dma.done [#allocation3], 1536
        $region36: #{tpu_custom_call.1} parent=31 // pred_fallthru
          _
        %s173 = smul.u32 2, %s18
        %p174 = scmp.lt.s32.totalorder %s173, 3
        %s175 = scalar_select %p174, %s173, 3
        %s176 = smul.addr %s175, 8
        %s177 = scalar_lea.vmem %s0, %s176
        %p178 = pneg %p39
        %p179 = pneg %p36
        %s180 = smul.u32 2, %s18
        %p181 = scmp.lt.s32.totalorder %s180, 3
        %s182 = scalar_select %p181, %s180, 3
        %s183 = smul.addr %s182, 8
        %s184 = scalar_lea.vmem %s1, %s183
        %p185 = pneg %p65
        %p186 = pneg %p62
        %p187 = pneg %p86
        %p188 = pneg %p83
        %p189 = pneg %p112
        %p190 = pneg %p109
        %s191 = sand.u32 %s99, 1
        %s192 = scalar_lea.sflag [#allocation4], %s191
        %s193 = sand.u32 %s99, 1
        %s194 = smul.addr %s193, 16
        %s195 = scalar_lea.vmem [#allocation5], %s194
        %s196 = smul.u32 2, %s18
        %p197 = scmp.lt.s32.totalorder %s196, 3
        %s198 = scalar_select %p197, %s196, 3
        %s199 = smul.addr %s198, 8
        %s200 = scalar_lea.vmem %s0, %s199
        %s201 = smul.u32 2, %s18
        %s202 = smul.u32 2, %s18
        %p203 = scmp.lt.s32.totalorder %s202, 3
        %s204 = scalar_select %p203, %s202, 3
        %s205 = smul.addr %s204, 8
        %s206 = scalar_lea.vmem %s1, %s205
        %s207 = smul.u32 2, %s18
        %s208 = smul.u32 2, %s18
        %v209 = vld [vmem:[%s200] sm:$0xff]
        %v210 = vld [vmem:[%s200 + $0x8] sm:$0xff]
        %v211 = vld [vmem:[%s206] sm:$0xff]
        %v212 = vld [vmem:[%s206 + $0x8] sm:$0xff]
        %v213 = vlaneseq
        %v214 = vand.u32 %v213, 127
        %215 = vset.pattern.permute.xlu0 0
        %216 = vperm.xlu0 %215, %v211
        %v217 = vpop.permute.xlu0 %216
        %218 = vset.pattern.permute.xlu0 0
        %219 = vperm.xlu0 %218, %v212
        %v220 = vpop.permute.xlu0 %219
        %vm221 = vcmp.eq.s32.totalorder %v214, %v217
        %vm222 = vcmp.eq.s32.totalorder %v214, %v220
        %223 = vset.pattern.permute.xlu0 1
        %224 = vperm.xlu0 %223, %v211
        %v225 = vpop.permute.xlu0 %224
        %226 = vset.pattern.permute.xlu0 1
        %227 = vperm.xlu0 %226, %v212
        %v228 = vpop.permute.xlu0 %227
        %vm229 = vcmp.eq.s32.totalorder %v214, %v225
        %vm230 = vcmp.eq.s32.totalorder %v214, %v228
        %vm231 = vmor %vm221, %vm229
        %vm232 = vmor %vm222, %vm230
        %233 = vset.pattern.permute.xlu0 2
        %234 = vperm.xlu0 %233, %v211
        %v235 = vpop.permute.xlu0 %234
        %236 = vset.pattern.permute.xlu0 2
        %237 = vperm.xlu0 %236, %v212
        %v238 = vpop.permute.xlu0 %237
        %vm239 = vcmp.eq.s32.totalorder %v214, %v235
        %vm240 = vcmp.eq.s32.totalorder %v214, %v238
        %vm241 = vmor %vm231, %vm239
        %vm242 = vmor %vm232, %vm240
        %243 = vset.pattern.permute.xlu0 3
        %244 = vperm.xlu0 %243, %v211
        %v245 = vpop.permute.xlu0 %244
        %246 = vset.pattern.permute.xlu0 3
        %247 = vperm.xlu0 %246, %v212
        %v248 = vpop.permute.xlu0 %247
        %vm249 = vcmp.eq.s32.totalorder %v214, %v245
        %vm250 = vcmp.eq.s32.totalorder %v214, %v248
        %vm251 = vmor %vm241, %vm249
        %vm252 = vmor %vm242, %vm250
        %253 = vset.pattern.permute.xlu0 4
        %254 = vperm.xlu0 %253, %v211
        %v255 = vpop.permute.xlu0 %254
        %256 = vset.pattern.permute.xlu0 4
        %257 = vperm.xlu0 %256, %v212
        %v258 = vpop.permute.xlu0 %257
        %vm259 = vcmp.eq.s32.totalorder %v214, %v255
        %vm260 = vcmp.eq.s32.totalorder %v214, %v258
        %vm261 = vmor %vm251, %vm259
        %vm262 = vmor %vm252, %vm260
        %v263 = vsel %vm261, 1, 0
        %v264 = vsel %vm262, 1, 0
        %v265 = vcvt.s32.f32 %v263
        %v266 = vcvt.s32.f32 %v264
        %269 = vrot.lane.b32.xlu0 %v265, 12
        %v270 = vpop.permute.xlu0 %269
        %271 = vrot.lane.b32.xlu0 %v266, 12
        %v272 = vpop.permute.xlu0 %271
        %vm275 = vcmask 97280
        %v276 = vsel %vm275, %v209, %v270
        %v277 = vsel %vm275, %v210, %v272
        %v278 = vld [vmem:[#allocation2] sm:$0xff]
        %v279 = vld [vmem:[#allocation2 + $0x8] sm:$0xff]
        %v280 = vld [vmem:[#allocation2 + $0x10] sm:$0xff]
        %v281 = vld [vmem:[#allocation2 + $0x18] sm:$0xff]
        %v282 = vld [vmem:[#allocation2 + $0x20] sm:$0xff]
        %v283 = vld [vmem:[#allocation2 + $0x28] sm:$0xff]
        %v284 = vld [vmem:[#allocation2 + $0x30] sm:$0xff]
        %v285 = vld [vmem:[#allocation2 + $0x38] sm:$0xff]
        %v286 = vld [vmem:[#allocation2 + $0x40] sm:$0xff]
        %v287 = vld [vmem:[#allocation2 + $0x48] sm:$0xff]
        %v288 = vld [vmem:[#allocation2 + $0x50] sm:$0xff]
        %v289 = vld [vmem:[#allocation2 + $0x58] sm:$0xff]
        %vm290 = vcmask 785408
        %v292 = vsel %vm290, %v276, 0
        %v295 = vsel %vm290, %v277, 0
        %297 = vmatprep.subr.mxu0 0.0
        %298 = vmatpush1.msra.mxu0 %v278
        %299 = vmatprep.subr.mxu0 0.0
        %300 = vmatpush1.msra.mxu0 %v279
        %301 = vmatprep.subr.mxu0 0.0
        %302 = vmatpush1.msra.mxu0 %v280
        %303 = vmatprep.subr.mxu0 0.0
        %304 = vmatpush1.msra.mxu0 %v281
        %305 = vmatprep.subr.mxu0 0.0
        %306 = vmatpush1.msra.mxu0 %v282
        %307 = vmatprep.subr.mxu0 0.0
        %308 = vmatpush1.msra.mxu0 %v283
        %309 = vmatprep.subr.mxu0 0.0
        %310 = vmatpush1.msra.mxu0 %v284
        %311 = vmatprep.subr.mxu0 0.0
        %312 = vmatpush1.msra.mxu0 %v285
        %313 = vmatprep.subr.mxu0 0.0
        %314 = vmatpush1.msra.mxu0 %v286
        %315 = vmatprep.subr.mxu0 0.0
        %316 = vmatpush1.msra.mxu0 %v287
        %317 = vmatprep.subr.mxu0 0.0
        %318 = vmatpush1.msra.mxu0 %v288
        %319 = vmatprep.subr.mxu0 0.0
        %320 = vmatpush1.msra.mxu0 %v289
        %321 = vmatprep.subr.mxu0 0.0
        %322 = vmatpush1.msra.mxu0 0.0
        %323 = vmatprep.subr.mxu0 0.0
        %324 = vmatpush1.msra.mxu0 0.0
        %325 = vmatprep.subr.mxu0 0.0
        %326 = vmatpush1.msra.mxu0 0.0
        %327 = vmatprep.subr.mxu0 0.0
        %328 = vmatpush1.msra.mxu0 0.0
        %329 = vmatprep.subr.mxu0 0.0
        %330 = vmatpush1.msra.mxu0 0.0
        %331 = vmatprep.subr.mxu0 0.0
        %332 = vmatpush1.msra.mxu0 0.0
        %333 = vmatprep.subr.mxu0 0.0
        %334 = vmatpush1.msra.mxu0 0.0
        %335 = vmatprep.subr.mxu0 0.0
        %336 = vmatpush1.msra.mxu0 0.0
        %337 = vmatprep.subr.mxu0 0.0
        %338 = vmatpush1.msra.mxu0 0.0
        %339 = vmatprep.subr.mxu0 0.0
        %340 = vmatpush1.msra.mxu0 0.0
        %341 = vmatprep.subr.mxu0 0.0
        %342 = vmatpush1.msra.mxu0 0.0
        %343 = vmatprep.subr.mxu0 0.0
        %344 = vmatpush1.msra.mxu0 0.0
        %345 = vmatprep.subr.mxu0 0.0
        %346 = vmatpush1.msra.mxu0 0.0
        %347 = vmatprep.subr.mxu0 0.0
        %348 = vmatpush1.msra.mxu0 0.0
        %349 = vmatprep.subr.mxu0 0.0
        %350 = vmatpush1.msra.mxu0 0.0
        %351 = vmatprep.subr.mxu0 0.0
        %352 = vmatpush1.msra.mxu0 0.0
        %353 = vmatprep.subr.mxu0 0.0
        %354 = vmatpush1.msra.mxu0 0.0
        %355 = vmatprep.subr.mxu0 0.0
        %356 = vmatpush1.msra.mxu0 0.0
        %357 = vmatprep.subr.mxu0 0.0
        %358 = vmatpush1.msra.mxu0 0.0
        %359 = vmatprep.subr.mxu0 0.0
        %360 = vmatpush1.msra.mxu0 0.0
        %361 = vmatprep.mubr.f32.mxu0 0.0
        %362 = vmatmul.mubr.f32.gmra.mrb[0].mxu0 %v292
        %v363 = vpop.f32.mrb[0].mxu0
        %v364 = vadd.f32 0.0, %v363
        %v365 = vpop.f32.mrb[0].mxu0
        %366 = vmatprep.mubr.f32.mxu0 0.0
        %367 = vmatmul.mubr.f32.gmra.mrb[0].mxu0 %v295
        %v368 = vpop.f32.mrb[0].mxu0
        %v369 = vadd.f32 0.0, %v368
        %v370 = vpop.f32.mrb[0].mxu0
        %371 = vdwg.mxu0
        %372 = vst [vmem:[%s195] sm:$0xff] %v364
        %373 = vst [vmem:[%s195 + $0x8] sm:$0xff] %v369
        %s374 = sand.u32 %s99, 1
        %s375 = scalar_lea.sflag [#allocation4], %s374
        %s376 = sand.u32 %s99, 1
        %s377 = smul.addr %s376, 16
        %s378 = scalar_lea.vmem [#allocation5], %s377
        // Predicated region
        $region37: #{tpu_custom_call.1} parent=31 // pred_check
          %p379 = pneg %p109
        $region38: #{tpu_custom_call.1} parent=31 // pred_check_branch
          %381 = sbr.rel (%p379) target = $region40
        $region39: #{tpu_custom_call.1} parent=31 // pred_region
          %s382 = smul.u32 2, %s18
          %s384 = ssub.s32 256, 256
          %385 = vsyncadd %s375, %s384
          %s386 = smul.addr %s382, 128
          %s387 = scalar_lea.hbm %s3, %s386
          %s388 = sshll.u32 %s378, 4
          %s389 = int_to_ptr.vmem [resolvable:$true] %s388
          %394 = dma.vmem_to_hbm [thread:$0]  %s389, 256, %s387, %s375, 128, 128, 8
        $region40: #{tpu_custom_call.1} parent=31 // pred_fallthru
          _
      $region32: #{tpu_custom_call.1} parent=5 // pred_fallthru
        _
      %p395 = scmp.le.s32.totalorder 2, %s13
      // Predicated region
      $region41: #{tpu_custom_call.1} parent=5 // pred_check
        %p396 = pneg %p395
      $region42: #{tpu_custom_call.1} parent=5 // pred_check_branch
        %398 = sbr.rel (%p396) target = $region44
      $region43: #{tpu_custom_call.1} parent=5 // pred_region
        %s399 = ssub.s32 %s13, 2
        // Predicated region
        $region45: #{tpu_custom_call.1} parent=43 // pred_check
          %p400 = pneg %p115
        $region46: #{tpu_custom_call.1} parent=43 // pred_check_branch
          %402 = sbr.rel (%p400) target = $region48
        $region47: #{tpu_custom_call.1} parent=43 // pred_region
          %s403 = sand.u32 %s100, 1
          %s404 = scalar_lea.sflag [#allocation4], %s403
          %s405 = sand.u32 %s100, 1
          %s406 = smul.addr %s405, 16
          %s407 = scalar_lea.vmem [#allocation5], %s406
          %408 = dma.done %s404, 256
        $region48: #{tpu_custom_call.1} parent=43 // pred_fallthru
          _
      $region44: #{tpu_custom_call.1} parent=5 // pred_fallthru
        _
    $region6: #{tpu_custom_call.1} parent=1 // loop_footer
      %s17 = sadd.s32 1, %s13
    $region7: #{tpu_custom_call.1} parent=1 // loop_footer_branch
      %12 = sbr.rel target = $region3
    $region8: #{tpu_custom_call.1} parent=1 // loop_exit
      _
    %409 = vsyncpa [#allocation3], 1
    %s410 = scalar_lea.sflag [#allocation3], 1
    %411 = vsyncpa %s410, 1
    %412 = vsyncpa [#allocation4], 1
    %s413 = scalar_lea.sflag [#allocation4], 1
    %414 = vsyncpa %s413, 1

</llo_original>
